<compile_context>
chip_gen: v7x
topology: tpu7x:2x2x1
jax: 0.10.0
libtpu: 0.0.40
codegen_flags: <defaults>
</compile_context>

<pallas_src>
import jax
import jax.numpy as jnp
import jax.scipy.linalg as jsl
from jax.experimental import pallas as pl
from jax.experimental.pallas import tpu as pltpu


def _round_up(x, m):
    return ((x + m - 1) // m) * m


# --------------------------------- kernel ----------------------------------
def _late_fusion_kernel(x_ref, w1_ref, w2_ref, wfc_ref, wcls_ref, bias_ref,
                        out_ref):
    N, _ = x_ref.shape            # N = bt * L flattened (batch, length) rows
    bt = out_ref.shape[0]
    L = N // bt
    H3 = w1_ref.shape[2]          # 3 * hidden ([audio | visual | text] lanes)
    H = wfc_ref.shape[1]
    nc_pad = wcls_ref.shape[1]

    # Boundary masks for the k=3 / padding=1 convs on the flattened row axis:
    # row l of a sequence has no x[l-1] at l == 0 and no x[l+1] at l == L-1.
    row = jax.lax.broadcasted_iota(jnp.int32, (N, 1), 0)
    has_prev = (row % L) != 0
    has_next = (row % L) != (L - 1)

    def conv3_relu(h, w_ref, b):
        # Conv1d(k=3, padding=1) for ALL batch rows at once: three
        # equal-shape matmuls (one per tap) accumulated in f32.  The shifted
        # activation copies are batched sublane shifts + boundary mask
        # (equivalent to pltpu.roll + mask; no per-batch Python loop).
        c = h.shape[1]
        zrow = jnp.zeros((1, c), jnp.float32)
        h_prev = jnp.where(has_prev,
                           jnp.concatenate([zrow, h[:-1, :]], axis=0), 0.0)
        h_next = jnp.where(has_next,
                           jnp.concatenate([h[1:, :], zrow], axis=0), 0.0)
        acc = jnp.dot(h, w_ref[1], preferred_element_type=jnp.float32)
        acc = acc + jnp.dot(h_prev, w_ref[0], preferred_element_type=jnp.float32)
        acc = acc + jnp.dot(h_next, w_ref[2], preferred_element_type=jnp.float32)
        return jnp.maximum(acc + b, 0.0)

    bias = bias_ref[...]
    x = x_ref[...]                                       # (N, C_total)

    # conv1 + ReLU and conv2 + ReLU for all three modality branches
    # (block-diagonal weights keep the branches independent).
    h1 = conv3_relu(x, w1_ref, bias[0:1, :H3])           # (N, 3H)
    h2 = conv3_relu(h1, w2_ref, bias[1:2, :H3])          # (N, 3H)

    # AdaptiveAvgPool1d(1): per-batch mean over the length axis.  Lane order
    # [audio | visual | text] already matches torch.cat(dim=1).
    pooled = jnp.mean(h2.reshape(bt, L, H3), axis=1)     # (bt, 3H)

    # fusion_fc + ReLU
    fused = jnp.maximum(
        jnp.dot(pooled, wfc_ref[...], preferred_element_type=jnp.float32)
        + bias[2:3, :H], 0.0)                            # (bt, H)
    # TODO(synk): nn.Dropout(0.5) is identity at inference; training-mode
    # masking would use pltpu.prng_seed / pltpu.prng_random_bits here.

    # classifier (output lanes padded to a 128 multiple -> dense vst).
    out_ref[...] = (
        jnp.dot(fused, wcls_ref[...], preferred_element_type=jnp.float32)
        + bias[3:4, :nc_pad])                            # (bt, nc_pad)


# ----------------------------- parameter prep ------------------------------
def prepare_params(p):
    """One-time re-layout of PyTorch-layout parameters into packed slabs.

    Conv weights (O, I, 3) -> per-tap block-diagonal (C_total, 3H) / (3H, 3H)
    matrices stacked as (3, ., .); Linear weights (O, I) -> (I, O); classifier
    zero-padded to a 128-lane multiple; all biases packed into one (4, lanes)
    slab (rows: conv1, conv2, fusion_fc, classifier).
    """
    H = p["fc_w"].shape[0]
    nc = p["cls_w"].shape[0]
    nc_pad = _round_up(nc, 128)
    bias_cols = max(_round_up(3 * H, 128), nc_pad)

    def tap(w, k):                      # (O, I, 3) -> (I, O) for tap k
        return w[:, :, k].T

    w1 = jnp.stack([jsl.block_diag(tap(p["a_w1"], k), tap(p["v_w1"], k),
                                   tap(p["t_w1"], k)) for k in range(3)])
    w2 = jnp.stack([jsl.block_diag(tap(p["a_w2"], k), tap(p["v_w2"], k),
                                   tap(p["t_w2"], k)) for k in range(3)])

    b1 = jnp.concatenate([p["a_b1"], p["v_b1"], p["t_b1"]])     # (3H,)
    b2 = jnp.concatenate([p["a_b2"], p["v_b2"], p["t_b2"]])     # (3H,)

    def brow(v):
        return jnp.pad(v, (0, bias_cols - v.shape[0]))

    biases = jnp.stack([brow(b1), brow(b2), brow(p["fc_b"]), brow(p["cls_b"])])

    return {
        "w1": w1,                                               # (3, C_tot, 3H)
        "w2": w2,                                               # (3, 3H, 3H)
        "w_fc": p["fc_w"].T,                                    # (3H, H)
        "w_cls": jnp.pad(p["cls_w"].T, ((0, 0), (0, nc_pad - nc))),  # (H, ncp)
        "biases": biases,                                       # (4, bias_cols)
    }


# --------------------------------- wrapper ---------------------------------
def late_fusion_cnn(audio, visual, text, kp, num_classes, batch_tile=None):
    """audio/visual/text: (B, C_m, L) float32 NCL inputs -> (B, num_classes).

    For large B, pick batch_tile so bt*L >= 128 (v5e) / 256 (v6e/v7x) and the
    grid has >= 2 steps on v7x (two TensorCores + input-DMA double buffering),
    while the per-step footprint (~bt*L*(C_tot + 2*3H)*4 B plus weight slabs)
    stays well inside VMEM (64 MiB on v7x).
    """
    B, _, L = audio.shape
    bt = B if batch_tile is None else batch_tile
    assert B % bt == 0
    assert bt == B or bt % 8 == 0, (
        "batch_tile < B must be a multiple of 8 so the (bt, 128) output block "
        "satisfies the (8, 128) BlockSpec rule")

    # NCL -> NLC -> (B*L, C) lane-dense rows; all three modalities packed
    # along the lane axis (one dense input slab instead of three lane-sparse
    # (C, L) blocks).  Done by XLA in the wrapper, off the kernel's hot path.
    def rows(x):
        b, c, l = x.shape
        return jnp.transpose(x, (0, 2, 1)).reshape(b * l, c)

    x_all = jnp.concatenate([rows(audio), rows(visual), rows(text)], axis=1)

    w1, w2 = kp["w1"], kp["w2"]
    wfc, wcls, biases = kp["w_fc"], kp["w_cls"], kp["biases"]
    nc_pad = wcls.shape[1]

    out = pl.pallas_call(
        _late_fusion_kernel,
        out_shape=jax.ShapeDtypeStruct((B, nc_pad), jnp.float32),
        grid=(B // bt,),
        in_specs=[
            pl.BlockSpec((bt * L, x_all.shape[1]), lambda i: (i, 0)),
            pl.BlockSpec(w1.shape, lambda i: (0, 0, 0)),
            pl.BlockSpec(w2.shape, lambda i: (0, 0, 0)),
            pl.BlockSpec(wfc.shape, lambda i: (0, 0)),
            pl.BlockSpec(wcls.shape, lambda i: (0, 0)),
            pl.BlockSpec(biases.shape, lambda i: (0, 0)),
        ],
        out_specs=pl.BlockSpec((bt, nc_pad), lambda i: (i, 0)),
        compiler_params=pltpu.CompilerParams(
            dimension_semantics=("parallel",)),
    )(x_all, w1, w2, wfc, wcls, biases)
    return out[:, :num_classes]


# ---------------- pure-JAX reference (torch-layout weights) ----------------
def _conv_relu_ref(x, w, b):
    y = jax.lax.conv_general_dilated(
        x, w, window_strides=(1,), padding=[(1, 1)],
        dimension_numbers=("NCH", "OIH", "NCH")) + b[None, :, None]
    return jnp.maximum(y, 0.0)


def ref_forward(audio, visual, text, p):
    def branch(x, w1, b1, w2, b2):
        h = _conv_relu_ref(x, w1, b1)
        h = _conv_relu_ref(h, w2, b2)
        return jnp.mean(h, axis=-1)                 # AdaptiveAvgPool1d(1)
    a = branch(audio, p["a_w1"], p["a_b1"], p["a_w2"], p["a_b2"])
    v = branch(visual, p["v_w1"], p["v_b1"], p["v_w2"], p["v_b2"])
    t = branch(text, p["t_w1"], p["t_b1"], p["t_w2"], p["t_b2"])
    fused = jnp.concatenate([a, v, t], axis=1)
    fused = jnp.maximum(fused @ p["fc_w"].T + p["fc_b"][None, :], 0.0)
    return fused @ p["cls_w"].T + p["cls_b"][None, :]


if __name__ == "__main__":
    B = 2
    AUDIO_DIM, VISUAL_DIM, TEXT_DIM = 4, 8, 6
    SEQ_LEN = 16
    HIDDEN = 32
    NUM_CLASSES = 8

    key = jax.random.PRNGKey(0)
    ks = list(jax.random.split(key, 19))

    audio = jax.random.normal(ks[0], (B, AUDIO_DIM, SEQ_LEN), jnp.float32)
    visual = jax.random.normal(ks[1], (B, VISUAL_DIM, SEQ_LEN), jnp.float32)
    text = jax.random.normal(ks[2], (B, TEXT_DIM, SEQ_LEN), jnp.float32)

    def nrm(k, shape):
        return 0.1 * jax.random.normal(k, shape, jnp.float32)

    torch_params = {
        "a_w1": nrm(ks[3], (HIDDEN, AUDIO_DIM, 3)),  "a_b1": nrm(ks[4], (HIDDEN,)),
        "a_w2": nrm(ks[5], (HIDDEN, HIDDEN, 3)),     "a_b2": nrm(ks[6], (HIDDEN,)),
        "v_w1": nrm(ks[7], (HIDDEN, VISUAL_DIM, 3)), "v_b1": nrm(ks[8], (HIDDEN,)),
        "v_w2": nrm(ks[9], (HIDDEN, HIDDEN, 3)),     "v_b2": nrm(ks[10], (HIDDEN,)),
        "t_w1": nrm(ks[11], (HIDDEN, TEXT_DIM, 3)),  "t_b1": nrm(ks[12], (HIDDEN,)),
        "t_w2": nrm(ks[13], (HIDDEN, HIDDEN, 3)),    "t_b2": nrm(ks[14], (HIDDEN,)),
        "fc_w": nrm(ks[15], (HIDDEN, 3 * HIDDEN)),   "fc_b": nrm(ks[16], (HIDDEN,)),
        "cls_w": nrm(ks[17], (NUM_CLASSES, HIDDEN)), "cls_b": nrm(ks[18], (NUM_CLASSES,)),
    }

    kernel_params = prepare_params(torch_params)

    out = late_fusion_cnn(audio, visual, text, kernel_params, NUM_CLASSES)
    out = jax.block_until_ready(out)

    ref = ref_forward(audio, visual, text, torch_params)
    assert out.shape == (B, NUM_CLASSES), out.shape
    assert jnp.allclose(out, ref, atol=1e-4, rtol=1e-4), (out, ref)

    print("KERNEL_OK")
</pallas_src>

<mosaic_0001>
module attributes {stable_mosaic.version = 11 : i64} {
  func.func @_late_fusion_kernel(%arg0: i32, %arg1: memref<32x18xf32, #tpu.memory_space<vmem>>, %arg2: memref<3x18x96xf32, #tpu.memory_space<vmem>>, %arg3: memref<3x96x96xf32, #tpu.memory_space<vmem>>, %arg4: memref<96x32xf32, #tpu.memory_space<vmem>>, %arg5: memref<32x128xf32, #tpu.memory_space<vmem>>, %arg6: memref<4x128xf32, #tpu.memory_space<vmem>>, %arg7: memref<2x128xf32, #tpu.memory_space<vmem>>) attributes {dimension_semantics = [#tpu.dimension_semantics<parallel>], iteration_bounds = array<i64: 1>, scalar_prefetch = 0 : i64, scratch_operands = 0 : i64, tpu.core_type = #tpu.core_type<tc>, window_params = [{transform_indices = @transform_0, window_bounds = array<i64: 32, 18>}, {pipeline_mode = #tpu.pipeline_mode<synchronous>, transform_indices = @transform_1, window_bounds = array<i64: 3, 18, 96>}, {pipeline_mode = #tpu.pipeline_mode<synchronous>, transform_indices = @transform_2, window_bounds = array<i64: 3, 96, 96>}, {pipeline_mode = #tpu.pipeline_mode<synchronous>, transform_indices = @transform_3, window_bounds = array<i64: 96, 32>}, {pipeline_mode = #tpu.pipeline_mode<synchronous>, transform_indices = @transform_4, window_bounds = array<i64: 32, 128>}, {pipeline_mode = #tpu.pipeline_mode<synchronous>, transform_indices = @transform_5, window_bounds = array<i64: 4, 128>}, {transform_indices = @transform_6, window_bounds = array<i64: 2, 128>}]} {
    %0 = tpu.iota {dimensions = array<i32: 0>} : vector<32x1xi32>
    %c16_i32 = arith.constant 16 : i32
    %c0_i32 = arith.constant 0 : i32
    %1 = arith.cmpi eq, %c16_i32, %c0_i32 : i32
    %c1_i32 = arith.constant 1 : i32
    %2 = arith.select %1, %c1_i32, %c16_i32 : i32
    %3 = vector.broadcast %2 : i32 to vector<32x1xi32>
    %4 = arith.remsi %0, %3 : vector<32x1xi32>
    %c0_i32_0 = arith.constant 0 : i32
    %5 = vector.broadcast %c0_i32_0 : i32 to vector<32x1xi32>
    %6 = arith.cmpi ne, %4, %5 : vector<32x1xi32>
    %c0_i32_1 = arith.constant 0 : i32
    %7 = vector.broadcast %c0_i32_1 : i32 to vector<32x1xi32>
    %8 = arith.cmpi slt, %4, %7 : vector<32x1xi32>
    %c0_i32_2 = arith.constant 0 : i32
    %9 = arith.cmpi slt, %2, %c0_i32_2 : i32
    %10 = vector.broadcast %9 : i1 to vector<32x1xi1>
    %11 = vector.broadcast %10 : vector<32x1xi1> to vector<32x1xi1>
    %12 = arith.xori %8, %11 : vector<32x1xi1>
    %13 = arith.andi %12, %6 : vector<32x1xi1>
    %14 = vector.broadcast %2 : i32 to vector<32x1xi32>
    %15 = arith.addi %4, %14 : vector<32x1xi32>
    %16 = arith.select %13, %15, %4 : vector<32x1xi1>, vector<32x1xi32>
    %c0_i32_3 = arith.constant 0 : i32
    %17 = vector.broadcast %c0_i32_3 : i32 to vector<32x1xi32>
    %18 = arith.cmpi ne, %16, %17 : vector<32x1xi32>
    %c16_i32_4 = arith.constant 16 : i32
    %c0_i32_5 = arith.constant 0 : i32
    %19 = arith.cmpi eq, %c16_i32_4, %c0_i32_5 : i32
    %c1_i32_6 = arith.constant 1 : i32
    %20 = arith.select %19, %c1_i32_6, %c16_i32_4 : i32
    %21 = vector.broadcast %20 : i32 to vector<32x1xi32>
    %22 = arith.remsi %0, %21 : vector<32x1xi32>
    %c0_i32_7 = arith.constant 0 : i32
    %23 = vector.broadcast %c0_i32_7 : i32 to vector<32x1xi32>
    %24 = arith.cmpi ne, %22, %23 : vector<32x1xi32>
    %c0_i32_8 = arith.constant 0 : i32
    %25 = vector.broadcast %c0_i32_8 : i32 to vector<32x1xi32>
    %26 = arith.cmpi slt, %22, %25 : vector<32x1xi32>
    %c0_i32_9 = arith.constant 0 : i32
    %27 = arith.cmpi slt, %20, %c0_i32_9 : i32
    %28 = vector.broadcast %27 : i1 to vector<32x1xi1>
    %29 = vector.broadcast %28 : vector<32x1xi1> to vector<32x1xi1>
    %30 = arith.xori %26, %29 : vector<32x1xi1>
    %31 = arith.andi %30, %24 : vector<32x1xi1>
    %32 = vector.broadcast %20 : i32 to vector<32x1xi32>
    %33 = arith.addi %22, %32 : vector<32x1xi32>
    %34 = arith.select %31, %33, %22 : vector<32x1xi1>, vector<32x1xi32>
    %c15_i32 = arith.constant 15 : i32
    %35 = vector.broadcast %c15_i32 : i32 to vector<32x1xi32>
    %36 = arith.cmpi ne, %34, %35 : vector<32x1xi32>
    %c0 = arith.constant 0 : index
    %c0_10 = arith.constant 0 : index
    %37 = vector.load %arg6[%c0, %c0_10] : memref<4x128xf32, #tpu.memory_space<vmem>>, vector<4x128xf32>
    %c0_11 = arith.constant 0 : index
    %c0_12 = arith.constant 0 : index
    %38 = vector.load %arg1[%c0_11, %c0_12] : memref<32x18xf32, #tpu.memory_space<vmem>>, vector<32x18xf32>
    %39 = vector.extract_strided_slice %37 {offsets = [0, 0], sizes = [1, 96], strides = [1, 1]} : vector<4x128xf32> to vector<1x96xf32>
    %cst = arith.constant 0.000000e+00 : f32
    %40 = vector.broadcast %cst : f32 to vector<1x18xf32>
    %41 = vector.extract_strided_slice %38 {offsets = [0, 0], sizes = [31, 18], strides = [1, 1]} : vector<32x18xf32> to vector<31x18xf32>
    %42 = tpu.concatenate %40, %41 in 0 : vector<1x18xf32>, vector<31x18xf32> -> vector<32x18xf32>
    %cst_13 = arith.constant 0.000000e+00 : f32
    %43 = vector.shape_cast %18 : vector<32x1xi1> to vector<32x1xi1>
    %44 = vector.broadcast %43 : vector<32x1xi1> to vector<32x18xi1>
    %45 = vector.broadcast %cst_13 : f32 to vector<32x18xf32>
    %46 = arith.select %44, %42, %45 : vector<32x18xi1>, vector<32x18xf32>
    %47 = vector.extract_strided_slice %38 {offsets = [1, 0], sizes = [31, 18], strides = [1, 1]} : vector<32x18xf32> to vector<31x18xf32>
    %48 = tpu.concatenate %47, %40 in 0 : vector<31x18xf32>, vector<1x18xf32> -> vector<32x18xf32>
    %cst_14 = arith.constant 0.000000e+00 : f32
    %49 = vector.shape_cast %36 : vector<32x1xi1> to vector<32x1xi1>
    %50 = vector.broadcast %49 : vector<32x1xi1> to vector<32x18xi1>
    %51 = vector.broadcast %cst_14 : f32 to vector<32x18xf32>
    %52 = arith.select %50, %48, %51 : vector<32x18xi1>, vector<32x18xf32>
    %c1 = arith.constant 1 : index
    %c0_15 = arith.constant 0 : index
    %c0_16 = arith.constant 0 : index
    %53 = vector.load %arg2[%c1, %c0_15, %c0_16] : memref<3x18x96xf32, #tpu.memory_space<vmem>>, vector<1x18x96xf32>
    %54 = vector.shape_cast %53 : vector<1x18x96xf32> to vector<18x96xf32>
    %cst_17 = arith.constant dense<0.000000e+00> : vector<32x96xf32>
    %55 = tpu.matmul %38, %54, %cst_17 {dimension_numbers = #tpu.dot_dimension_numbers<[1], [0], [0], [1], [0, 0, 1, 1], [], []>} : vector<32x18xf32>, vector<18x96xf32>, vector<32x96xf32> -> vector<32x96xf32>
    %c0_18 = arith.constant 0 : index
    %c0_19 = arith.constant 0 : index
    %c0_20 = arith.constant 0 : index
    %56 = vector.load %arg2[%c0_18, %c0_19, %c0_20] : memref<3x18x96xf32, #tpu.memory_space<vmem>>, vector<1x18x96xf32>
    %57 = vector.shape_cast %56 : vector<1x18x96xf32> to vector<18x96xf32>
    %cst_21 = arith.constant dense<0.000000e+00> : vector<32x96xf32>
    %58 = tpu.matmul %46, %57, %cst_21 {dimension_numbers = #tpu.dot_dimension_numbers<[1], [0], [0], [1], [0, 0, 1, 1], [], []>} : vector<32x18xf32>, vector<18x96xf32>, vector<32x96xf32> -> vector<32x96xf32>
    %59 = arith.addf %55, %58 : vector<32x96xf32>
    %c2 = arith.constant 2 : index
    %c0_22 = arith.constant 0 : index
    %c0_23 = arith.constant 0 : index
    %60 = vector.load %arg2[%c2, %c0_22, %c0_23] : memref<3x18x96xf32, #tpu.memory_space<vmem>>, vector<1x18x96xf32>
    %61 = vector.shape_cast %60 : vector<1x18x96xf32> to vector<18x96xf32>
    %cst_24 = arith.constant dense<0.000000e+00> : vector<32x96xf32>
    %62 = tpu.matmul %52, %61, %cst_24 {dimension_numbers = #tpu.dot_dimension_numbers<[1], [0], [0], [1], [0, 0, 1, 1], [], []>} : vector<32x18xf32>, vector<18x96xf32>, vector<32x96xf32> -> vector<32x96xf32>
    %63 = arith.addf %59, %62 : vector<32x96xf32>
    %64 = vector.broadcast %39 : vector<1x96xf32> to vector<32x96xf32>
    %65 = arith.addf %63, %64 : vector<32x96xf32>
    %cst_25 = arith.constant 0.000000e+00 : f32
    %66 = vector.broadcast %cst_25 : f32 to vector<32x96xf32>
    %67 = arith.maximumf %65, %66 : vector<32x96xf32>
    %68 = vector.extract_strided_slice %37 {offsets = [1, 0], sizes = [1, 96], strides = [1, 1]} : vector<4x128xf32> to vector<1x96xf32>
    %cst_26 = arith.constant 0.000000e+00 : f32
    %69 = vector.broadcast %cst_26 : f32 to vector<1x96xf32>
    %70 = vector.extract_strided_slice %67 {offsets = [0, 0], sizes = [31, 96], strides = [1, 1]} : vector<32x96xf32> to vector<31x96xf32>
    %71 = tpu.concatenate %69, %70 in 0 : vector<1x96xf32>, vector<31x96xf32> -> vector<32x96xf32>
    %cst_27 = arith.constant 0.000000e+00 : f32
    %72 = vector.shape_cast %18 : vector<32x1xi1> to vector<32x1xi1>
    %73 = vector.broadcast %72 : vector<32x1xi1> to vector<32x96xi1>
    %74 = vector.broadcast %cst_27 : f32 to vector<32x96xf32>
    %75 = arith.select %73, %71, %74 : vector<32x96xi1>, vector<32x96xf32>
    %76 = vector.extract_strided_slice %67 {offsets = [1, 0], sizes = [31, 96], strides = [1, 1]} : vector<32x96xf32> to vector<31x96xf32>
    %77 = tpu.concatenate %76, %69 in 0 : vector<31x96xf32>, vector<1x96xf32> -> vector<32x96xf32>
    %cst_28 = arith.constant 0.000000e+00 : f32
    %78 = vector.shape_cast %36 : vector<32x1xi1> to vector<32x1xi1>
    %79 = vector.broadcast %78 : vector<32x1xi1> to vector<32x96xi1>
    %80 = vector.broadcast %cst_28 : f32 to vector<32x96xf32>
    %81 = arith.select %79, %77, %80 : vector<32x96xi1>, vector<32x96xf32>
    %c1_29 = arith.constant 1 : index
    %c0_30 = arith.constant 0 : index
    %c0_31 = arith.constant 0 : index
    %82 = vector.load %arg3[%c1_29, %c0_30, %c0_31] : memref<3x96x96xf32, #tpu.memory_space<vmem>>, vector<1x96x96xf32>
    %83 = vector.shape_cast %82 : vector<1x96x96xf32> to vector<96x96xf32>
    %cst_32 = arith.constant dense<0.000000e+00> : vector<32x96xf32>
    %84 = tpu.matmul %67, %83, %cst_32 {dimension_numbers = #tpu.dot_dimension_numbers<[1], [0], [0], [1], [0, 0, 1, 1], [], []>} : vector<32x96xf32>, vector<96x96xf32>, vector<32x96xf32> -> vector<32x96xf32>
    %c0_33 = arith.constant 0 : index
    %c0_34 = arith.constant 0 : index
    %c0_35 = arith.constant 0 : index
    %85 = vector.load %arg3[%c0_33, %c0_34, %c0_35] : memref<3x96x96xf32, #tpu.memory_space<vmem>>, vector<1x96x96xf32>
    %86 = vector.shape_cast %85 : vector<1x96x96xf32> to vector<96x96xf32>
    %cst_36 = arith.constant dense<0.000000e+00> : vector<32x96xf32>
    %87 = tpu.matmul %75, %86, %cst_36 {dimension_numbers = #tpu.dot_dimension_numbers<[1], [0], [0], [1], [0, 0, 1, 1], [], []>} : vector<32x96xf32>, vector<96x96xf32>, vector<32x96xf32> -> vector<32x96xf32>
    %88 = arith.addf %84, %87 : vector<32x96xf32>
    %c2_37 = arith.constant 2 : index
    %c0_38 = arith.constant 0 : index
    %c0_39 = arith.constant 0 : index
    %89 = vector.load %arg3[%c2_37, %c0_38, %c0_39] : memref<3x96x96xf32, #tpu.memory_space<vmem>>, vector<1x96x96xf32>
    %90 = vector.shape_cast %89 : vector<1x96x96xf32> to vector<96x96xf32>
    %cst_40 = arith.constant dense<0.000000e+00> : vector<32x96xf32>
    %91 = tpu.matmul %81, %90, %cst_40 {dimension_numbers = #tpu.dot_dimension_numbers<[1], [0], [0], [1], [0, 0, 1, 1], [], []>} : vector<32x96xf32>, vector<96x96xf32>, vector<32x96xf32> -> vector<32x96xf32>
    %92 = arith.addf %88, %91 : vector<32x96xf32>
    %93 = vector.broadcast %68 : vector<1x96xf32> to vector<32x96xf32>
    %94 = arith.addf %92, %93 : vector<32x96xf32>
    %cst_41 = arith.constant 0.000000e+00 : f32
    %95 = vector.broadcast %cst_41 : f32 to vector<32x96xf32>
    %96 = arith.maximumf %94, %95 : vector<32x96xf32>
    %97 = vector.shape_cast %96 : vector<32x96xf32> to vector<2x16x96xf32>
    %cst_42 = arith.constant dense<0.000000e+00> : vector<2x96xf32>
    %98 = vector.multi_reduction <add>, %97, %cst_42 [1] : vector<2x16x96xf32> to vector<2x96xf32>
    %cst_43 = arith.constant 1.600000e+01 : f32
    %99 = vector.broadcast %cst_43 : f32 to vector<2x96xf32>
    %100 = arith.divf %98, %99 : vector<2x96xf32>
    %c0_44 = arith.constant 0 : index
    %c0_45 = arith.constant 0 : index
    %101 = vector.load %arg4[%c0_44, %c0_45] : memref<96x32xf32, #tpu.memory_space<vmem>>, vector<96x32xf32>
    %cst_46 = arith.constant dense<0.000000e+00> : vector<2x32xf32>
    %102 = tpu.matmul %100, %101, %cst_46 {dimension_numbers = #tpu.dot_dimension_numbers<[1], [0], [0], [1], [0, 0, 1, 1], [], []>} : vector<2x96xf32>, vector<96x32xf32>, vector<2x32xf32> -> vector<2x32xf32>
    %103 = vector.extract_strided_slice %37 {offsets = [2, 0], sizes = [1, 32], strides = [1, 1]} : vector<4x128xf32> to vector<1x32xf32>
    %104 = vector.broadcast %103 : vector<1x32xf32> to vector<2x32xf32>
    %105 = arith.addf %102, %104 : vector<2x32xf32>
    %cst_47 = arith.constant 0.000000e+00 : f32
    %106 = vector.broadcast %cst_47 : f32 to vector<2x32xf32>
    %107 = arith.maximumf %105, %106 : vector<2x32xf32>
    %c0_48 = arith.constant 0 : index
    %c0_49 = arith.constant 0 : index
    %108 = vector.load %arg5[%c0_48, %c0_49] : memref<32x128xf32, #tpu.memory_space<vmem>>, vector<32x128xf32>
    %cst_50 = arith.constant dense<0.000000e+00> : vector<2x128xf32>
    %109 = tpu.matmul %107, %108, %cst_50 {dimension_numbers = #tpu.dot_dimension_numbers<[1], [0], [0], [1], [0, 0, 1, 1], [], []>} : vector<2x32xf32>, vector<32x128xf32>, vector<2x128xf32> -> vector<2x128xf32>
    %110 = vector.extract_strided_slice %37 {offsets = [3, 0], sizes = [1, 128], strides = [1, 1]} : vector<4x128xf32> to vector<1x128xf32>
    %111 = vector.broadcast %110 : vector<1x128xf32> to vector<2x128xf32>
    %112 = arith.addf %109, %111 : vector<2x128xf32>
    %c0_51 = arith.constant 0 : index
    %c0_52 = arith.constant 0 : index
    %113 = vector.load %arg7[%c0_51, %c0_52] : memref<2x128xf32, #tpu.memory_space<vmem>>, vector<2x128xf32>
    tpu.vector_store %arg7[%c0_51, %c0_52], %112 {strides = array<i32>} : memref<2x128xf32, #tpu.memory_space<vmem>>, vector<2x128xf32>,
    return
  }
  func.func @transform_0(%arg0: i32) -> (i32, i32) {
    %c0_i32 = arith.constant 0 : i32
    %c0_i32_0 = arith.constant 0 : i32
    return %arg0, %c0_i32 : i32, i32
  }
  func.func @transform_1(%arg0: i32) -> (i32, i32, i32) {
    %c0_i32 = arith.constant 0 : i32
    %c0_i32_0 = arith.constant 0 : i32
    %c0_i32_1 = arith.constant 0 : i32
    %c0_i32_2 = arith.constant 0 : i32
    return %c0_i32, %c0_i32_0, %c0_i32_1 : i32, i32, i32
  }
  func.func @transform_2(%arg0: i32) -> (i32, i32, i32) {
    %c0_i32 = arith.constant 0 : i32
    %c0_i32_0 = arith.constant 0 : i32
    %c0_i32_1 = arith.constant 0 : i32
    %c0_i32_2 = arith.constant 0 : i32
    return %c0_i32, %c0_i32_0, %c0_i32_1 : i32, i32, i32
  }
  func.func @transform_3(%arg0: i32) -> (i32, i32) {
    %c0_i32 = arith.constant 0 : i32
    %c0_i32_0 = arith.constant 0 : i32
    %c0_i32_1 = arith.constant 0 : i32
    return %c0_i32, %c0_i32_0 : i32, i32
  }
  func.func @transform_4(%arg0: i32) -> (i32, i32) {
    %c0_i32 = arith.constant 0 : i32
    %c0_i32_0 = arith.constant 0 : i32
    %c0_i32_1 = arith.constant 0 : i32
    return %c0_i32, %c0_i32_0 : i32, i32
  }
  func.func @transform_5(%arg0: i32) -> (i32, i32) {
    %c0_i32 = arith.constant 0 : i32
    %c0_i32_0 = arith.constant 0 : i32
    %c0_i32_1 = arith.constant 0 : i32
    return %c0_i32, %c0_i32_0 : i32, i32
  }
  func.func @transform_6(%arg0: i32) -> (i32, i32) {
    %c0_i32 = arith.constant 0 : i32
    %c0_i32_0 = arith.constant 0 : i32
    return %arg0, %c0_i32 : i32, i32
  }
}

</mosaic_0001>

<llo_original>
// kernel: tpu_custom_call.1
$region0: #{tpu_custom_call.1}
  #allocation0 [shape = 'u32[]', space=smem, size = 0x4, offset = 0x4, fixed_abs, tag = 'smem constant byte address 0x4 - core index']
  #allocation1 [shape = 'u32[144,128]{1,0:T(1,128)}', space=vmem, size = 0x12000, scoped, tag = 'internal scratch']
  %s0 = inlined_call_operand.vmem [shape: f32[32,18], index: 0, kind: input, shape index: {}]
  %s1 = inlined_call_operand.vmem [shape: f32[3,18,96], index: 1, kind: input, shape index: {}]
  %s2 = inlined_call_operand.hbm [shape: f32[3,96,96], index: 2, kind: input, shape index: {}]
  %s3 = inlined_call_operand.vmem [shape: f32[96,32], index: 3, kind: input, shape index: {}]
  %s4 = inlined_call_operand.vmem [shape: f32[32,128], index: 4, kind: input, shape index: {}]
  %s5 = inlined_call_operand.vmem [shape: f32[4,128], index: 5, kind: input, shape index: {}]
  %s6 = inlined_call_operand.hbm [shape: f32[2,128], index: 6, kind: output, shape index: {}]
  %s7 = sld [smem:[#allocation0]]
  $region38: #{tpu_custom_call.1} parent=0
    _
  %s9 = ssub.s32 1, %s7
  %s10 = scalar_select 0, %s9, %s7
  $region1: #{tpu_custom_call.1} parent=0
    #allocation2 [shape = 'u8[147456]{0}', space=vmem, size = 0x24000, scoped, tag = 'input window, operand 2, single buffered']
    #allocation3 [shape = 's32[1]{0}', space=sflag, size = 0x4, scoped, tag = 'scoped memory for tpu_custom_call.1']
    #allocation4 [shape = 's32[1]{0}', space=sflag, size = 0x4, scoped, tag = 'scoped memory for tpu_custom_call.1']
    #allocation5 [shape = 'u8[1024]{0}', space=vmem, size = 0x400, scoped, tag = 'output window, operand 0, single buffered']
    %11 = vsyncpa [#allocation3], 0
    %12 = vsyncpa [#allocation4], 0
    // Predicated region
    $region2: #{tpu_custom_call.1} parent=1 // pred_check
      _
    $region3: #{tpu_custom_call.1} parent=1 // pred_check_branch
      %14 = sbr.rel (0) target = $region5
    $region4: #{tpu_custom_call.1} parent=1 // pred_region
      _
    $region5: #{tpu_custom_call.1} parent=1 // pred_fallthru
      _
    // Predicated region
    $region6: #{tpu_custom_call.1} parent=1 // pred_check
      _
    $region7: #{tpu_custom_call.1} parent=1 // pred_check_branch
      %16 = sbr.rel (0) target = $region9
    $region8: #{tpu_custom_call.1} parent=1 // pred_region
      _
    $region9: #{tpu_custom_call.1} parent=1 // pred_fallthru
      _
    // Predicated region
    $region10: #{tpu_custom_call.1} parent=1 // pred_check
      _
    $region11: #{tpu_custom_call.1} parent=1 // pred_check_branch
      %18 = sbr.rel (0) target = $region13
    $region12: #{tpu_custom_call.1} parent=1 // pred_region
      %s20 = ssub.s32 4608, 4608
      %21 = vsyncadd [#allocation3], %s20
      %s22 = sshll.u32 [#allocation2], 4
      %s23 = int_to_ptr.vmem [resolvable:$true] %s22
      %28 = dma.hbm_to_vmem [thread:$0]  %s2, 4608, %s23, [#allocation3], 128, 128, 8
    $region13: #{tpu_custom_call.1} parent=1 // pred_fallthru
      _
    // Predicated region
    $region14: #{tpu_custom_call.1} parent=1 // pred_check
      _
    $region15: #{tpu_custom_call.1} parent=1 // pred_check_branch
      %30 = sbr.rel (0) target = $region17
    $region16: #{tpu_custom_call.1} parent=1 // pred_region
      _
    $region17: #{tpu_custom_call.1} parent=1 // pred_fallthru
      _
    // Predicated region
    $region18: #{tpu_custom_call.1} parent=1 // pred_check
      _
    $region19: #{tpu_custom_call.1} parent=1 // pred_check_branch
      %32 = sbr.rel (0) target = $region21
    $region20: #{tpu_custom_call.1} parent=1 // pred_region
      _
    $region21: #{tpu_custom_call.1} parent=1 // pred_fallthru
      _
    // Predicated region
    $region22: #{tpu_custom_call.1} parent=1 // pred_check
      _
    $region23: #{tpu_custom_call.1} parent=1 // pred_check_branch
      %34 = sbr.rel (0) target = $region25
    $region24: #{tpu_custom_call.1} parent=1 // pred_region
      _
    $region25: #{tpu_custom_call.1} parent=1 // pred_fallthru
      _
    // Predicated region
    $region26: #{tpu_custom_call.1} parent=1 // pred_check
      _
    $region27: #{tpu_custom_call.1} parent=1 // pred_check_branch
      %36 = sbr.rel (0) target = $region29
    $region28: #{tpu_custom_call.1} parent=1 // pred_region
      %37 = dma.done [#allocation3], 4608
    $region29: #{tpu_custom_call.1} parent=1 // pred_fallthru
      _
    %v38 = vlaneseq
    %v39 = vshrl.u32 %v38, 7
    %v40 = vadd.s32 %v39, 8
    %v41 = vadd.s32 %v39, 16
    %v42 = vadd.s32 %v39, 24
    %vm43 = vcmp.lt.s32.totalorder %v39, 0
    %v44 = vsub.s32 0, %v39
    %v45 = vsel %vm43, %v44, %v39
    %v46 = vshrl.u32 %v45, 4
    %v47 = vand.u32 %v45, 15
    %v48 = vsub.s32 0, %v47
    %v49 = vsel %vm43, %v48, %v47
    %vm50 = vcmp.lt.s32.totalorder %v40, 0
    %v51 = vsub.s32 0, %v40
    %v52 = vsel %vm50, %v51, %v40
    %v53 = vshrl.u32 %v52, 4
    %v54 = vand.u32 %v52, 15
    %v55 = vsub.s32 0, %v54
    %v56 = vsel %vm50, %v55, %v54
    %vm57 = vcmp.lt.s32.totalorder %v41, 0
    %v58 = vsub.s32 0, %v41
    %v59 = vsel %vm57, %v58, %v41
    %v60 = vshrl.u32 %v59, 4
    %v61 = vand.u32 %v59, 15
    %v62 = vsub.s32 0, %v61
    %v63 = vsel %vm57, %v62, %v61
    %vm64 = vcmp.lt.s32.totalorder %v42, 0
    %v65 = vsub.s32 0, %v42
    %v66 = vsel %vm64, %v65, %v42
    %v67 = vshrl.u32 %v66, 4
    %v68 = vand.u32 %v66, 15
    %v69 = vsub.s32 0, %v68
    %v70 = vsel %vm64, %v69, %v68
    %vm71 = vcmp.ne.s32.totalorder %v49, 0
    %vm72 = vcmp.ne.s32.totalorder %v56, 0
    %vm73 = vcmp.ne.s32.totalorder %v63, 0
    %vm74 = vcmp.ne.s32.totalorder %v70, 0
    %vm75 = vcmp.lt.s32.totalorder %v49, 0
    %vm76 = vcmp.lt.s32.totalorder %v56, 0
    %vm77 = vcmp.lt.s32.totalorder %v63, 0
    %vm78 = vcmp.lt.s32.totalorder %v70, 0
    %vm79 = vmand %vm75, %vm71
    %vm80 = vmand %vm76, %vm72
    %vm81 = vmand %vm77, %vm73
    %vm82 = vmand %vm78, %vm74
    %v83 = vadd.s32 %v49, 16
    %v84 = vadd.s32 %v56, 16
    %v85 = vadd.s32 %v63, 16
    %v86 = vadd.s32 %v70, 16
    %v87 = vsel %vm79, %v83, %v49
    %v88 = vsel %vm80, %v84, %v56
    %v89 = vsel %vm81, %v85, %v63
    %v90 = vsel %vm82, %v86, %v70
    %vm91 = vcmp.ne.s32.totalorder %v87, 0
    %vm92 = vcmp.ne.s32.totalorder %v88, 0
    %vm93 = vcmp.ne.s32.totalorder %v89, 0
    %vm94 = vcmp.ne.s32.totalorder %v90, 0
    %vm95 = vcmp.ne.s32.totalorder %v87, 15
    %vm96 = vcmp.ne.s32.totalorder %v88, 15
    %vm97 = vcmp.ne.s32.totalorder %v89, 15
    %vm98 = vcmp.ne.s32.totalorder %v90, 15
    %v99 = vld [vmem:[%s5] sm:$0xf]
    %v100 = vld [vmem:[%s0] sm:$0xff]
    %v101 = vld [vmem:[%s0 + $0x8] sm:$0xff]
    %v102 = vld [vmem:[%s0 + $0x10] sm:$0xff]
    %v103 = vld [vmem:[%s0 + $0x18] sm:$0xff]
    %vm108 = vcmask 1040384
    %v109 = vrot.slane %v100, 7
    %v110 = vrot.slane %v101, 7
    %v111 = vsel %vm108, %v109, %v110
    %v112 = vrot.slane %v102, 7
    %v113 = vsel %vm108, %v110, %v112
    %v114 = vrot.slane %v103, 7
    %v115 = vsel %vm108, %v112, %v114
    %v120 = vsel %vm108, 0.0, %v109
    %v121 = vsel %vm91, 1, 0
    %v122 = vsel %vm92, 1, 0
    %v123 = vsel %vm93, 1, 0
    %v124 = vsel %vm94, 1, 0
    %vm125 = vcmp.eq.s32.totalorder %v121, 1
    %vm126 = vcmp.eq.s32.totalorder %v122, 1
    %vm127 = vcmp.eq.s32.totalorder %v123, 1
    %vm128 = vcmp.eq.s32.totalorder %v124, 1
    %v129 = vsel %vm125, %v120, 0.0
    %v130 = vsel %vm126, %v111, 0.0
    %v131 = vsel %vm127, %v113, 0.0
    %v132 = vsel %vm128, %v115, 0.0
    %vm133 = vcmask 1046528
    %v134 = vrot.slane %v100, 1
    %v135 = vrot.slane %v101, 1
    %v136 = vsel %vm133, %v134, %v135
    %v137 = vrot.slane %v102, 1
    %v138 = vsel %vm133, %v135, %v137
    %v139 = vrot.slane %v103, 1
    %v140 = vsel %vm133, %v137, %v139
    %v145 = vsel %vm133, %v139, 0.0
    %v146 = vsel %vm95, 1, 0
    %v147 = vsel %vm96, 1, 0
    %v148 = vsel %vm97, 1, 0
    %v149 = vsel %vm98, 1, 0
    %vm150 = vcmp.eq.s32.totalorder %v146, 1
    %vm151 = vcmp.eq.s32.totalorder %v147, 1
    %vm152 = vcmp.eq.s32.totalorder %v148, 1
    %vm153 = vcmp.eq.s32.totalorder %v149, 1
    %v154 = vsel %vm150, %v136, 0.0
    %v155 = vsel %vm151, %v138, 0.0
    %v156 = vsel %vm152, %v140, 0.0
    %v157 = vsel %vm153, %v145, 0.0
    %s158 = scalar_lea.vmem %s1, 24
    %v159 = vld [vmem:[%s158] sm:$0xff]
    %v160 = vld [vmem:[%s158 + $0x8] sm:$0xff]
    %v161 = vld [vmem:[%s158 + $0x10] sm:$0x3]
    %v162 = vld [vmem:[%s1] sm:$0xff]
    %v163 = vld [vmem:[%s1 + $0x8] sm:$0xff]
    %v164 = vld [vmem:[%s1 + $0x10] sm:$0x3]
    %vm165 = vcmask 146432
    %v167 = vsel %vm165, %v129, 0
    %v170 = vsel %vm165, %v130, 0
    %v173 = vsel %vm165, %v131, 0
    %v176 = vsel %vm165, %v132, 0
    %vm178 = vcmask 1041408
    %v180 = vsel %vm178, %v164, 0
    %182 = vmatprep.subr.mxu0 0.0
    %183 = vmatpush1.msra.mxu0 %v162
    %184 = vmatprep.subr.mxu0 0.0
    %185 = vmatpush1.msra.mxu0 %v163
    %186 = vmatprep.subr.mxu0 0.0
    %187 = vmatpush1.msra.mxu0 %v180
    %188 = vmatprep.subr.mxu0 0.0
    %189 = vmatpush1.msra.mxu0 0.0
    %190 = vmatprep.subr.mxu0 0.0
    %191 = vmatpush1.msra.mxu0 0.0
    %192 = vmatprep.subr.mxu0 0.0
    %193 = vmatpush1.msra.mxu0 0.0
    %194 = vmatprep.subr.mxu0 0.0
    %195 = vmatpush1.msra.mxu0 0.0
    %196 = vmatprep.subr.mxu0 0.0
    %197 = vmatpush1.msra.mxu0 0.0
    %198 = vmatprep.subr.mxu0 0.0
    %199 = vmatpush1.msra.mxu0 0.0
    %200 = vmatprep.subr.mxu0 0.0
    %201 = vmatpush1.msra.mxu0 0.0
    %202 = vmatprep.subr.mxu0 0.0
    %203 = vmatpush1.msra.mxu0 0.0
    %204 = vmatprep.subr.mxu0 0.0
    %205 = vmatpush1.msra.mxu0 0.0
    %206 = vmatprep.subr.mxu0 0.0
    %207 = vmatpush1.msra.mxu0 0.0
    %208 = vmatprep.subr.mxu0 0.0
    %209 = vmatpush1.msra.mxu0 0.0
    %210 = vmatprep.subr.mxu0 0.0
    %211 = vmatpush1.msra.mxu0 0.0
    %212 = vmatprep.subr.mxu0 0.0
    %213 = vmatpush1.msra.mxu0 0.0
    %214 = vmatprep.subr.mxu0 0.0
    %215 = vmatpush1.msra.mxu0 0.0
    %216 = vmatprep.subr.mxu0 0.0
    %217 = vmatpush1.msra.mxu0 0.0
    %218 = vmatprep.subr.mxu0 0.0
    %219 = vmatpush1.msra.mxu0 0.0
    %220 = vmatprep.subr.mxu0 0.0
    %221 = vmatpush1.msra.mxu0 0.0
    %222 = vmatprep.subr.mxu0 0.0
    %223 = vmatpush1.msra.mxu0 0.0
    %224 = vmatprep.subr.mxu0 0.0
    %225 = vmatpush1.msra.mxu0 0.0
    %226 = vmatprep.subr.mxu0 0.0
    %227 = vmatpush1.msra.mxu0 0.0
    %228 = vmatprep.subr.mxu0 0.0
    %229 = vmatpush1.msra.mxu0 0.0
    %230 = vmatprep.subr.mxu0 0.0
    %231 = vmatpush1.msra.mxu0 0.0
    %232 = vmatprep.subr.mxu0 0.0
    %233 = vmatpush1.msra.mxu0 0.0
    %234 = vmatprep.subr.mxu0 0.0
    %235 = vmatpush1.msra.mxu0 0.0
    %236 = vmatprep.subr.mxu0 0.0
    %237 = vmatpush1.msra.mxu0 0.0
    %238 = vmatprep.subr.mxu0 0.0
    %239 = vmatpush1.msra.mxu0 0.0
    %240 = vmatprep.subr.mxu0 0.0
    %241 = vmatpush1.msra.mxu0 0.0
    %242 = vmatprep.subr.mxu0 0.0
    %243 = vmatpush1.msra.mxu0 0.0
    %244 = vmatprep.subr.mxu0 0.0
    %245 = vmatpush1.msra.mxu0 0.0
    %246 = vmatprep.mubr.f32.mxu0 0.0
    %247 = vmatmul.mubr.f32.gmra.mrb[0].mxu0 %v167
    %v248 = vpop.f32.mrb[0].mxu0
    %v249 = vadd.f32 0.0, %v248
    %v250 = vpop.f32.mrb[0].mxu0
    %251 = vmatprep.mubr.f32.mxu0 0.0
    %252 = vmatmul.mubr.f32.gmra.mrb[0].mxu0 %v170
    %v253 = vpop.f32.mrb[0].mxu0
    %v254 = vadd.f32 0.0, %v253
    %v255 = vpop.f32.mrb[0].mxu0
    %256 = vmatprep.mubr.f32.mxu0 0.0
    %257 = vmatmul.mubr.f32.gmra.mrb[0].mxu0 %v173
    %v258 = vpop.f32.mrb[0].mxu0
    %v259 = vadd.f32 0.0, %v258
    %v260 = vpop.f32.mrb[0].mxu0
    %261 = vmatprep.mubr.f32.mxu0 0.0
    %262 = vmatmul.mubr.f32.gmra.mrb[0].mxu0 %v176
    %v263 = vpop.f32.mrb[0].mxu0
    %v264 = vadd.f32 0.0, %v263
    %v265 = vpop.f32.mrb[0].mxu0
    %266 = vdwg.mxu0
    %v267 = vsel %vm165, %v100, 0
    %v269 = vsel %vm165, %v101, 0
    %v271 = vsel %vm165, %v102, 0
    %v273 = vsel %vm165, %v103, 0
    %v276 = vsel %vm178, %v161, 0
    %278 = vmatprep.subr.mxu0 0.0
    %279 = vmatpush1.msra.mxu0 %v159
    %280 = vmatprep.subr.mxu0 0.0
    %281 = vmatpush1.msra.mxu0 %v160
    %282 = vmatprep.subr.mxu0 0.0
    %283 = vmatpush1.msra.mxu0 %v276
    %284 = vmatprep.subr.mxu0 0.0
    %285 = vmatpush1.msra.mxu0 0.0
    %286 = vmatprep.subr.mxu0 0.0
    %287 = vmatpush1.msra.mxu0 0.0
    %288 = vmatprep.subr.mxu0 0.0
    %289 = vmatpush1.msra.mxu0 0.0
    %290 = vmatprep.subr.mxu0 0.0
    %291 = vmatpush1.msra.mxu0 0.0
    %292 = vmatprep.subr.mxu0 0.0
    %293 = vmatpush1.msra.mxu0 0.0
    %294 = vmatprep.subr.mxu0 0.0
    %295 = vmatpush1.msra.mxu0 0.0
    %296 = vmatprep.subr.mxu0 0.0
    %297 = vmatpush1.msra.mxu0 0.0
    %298 = vmatprep.subr.mxu0 0.0
    %299 = vmatpush1.msra.mxu0 0.0
    %300 = vmatprep.subr.mxu0 0.0
    %301 = vmatpush1.msra.mxu0 0.0
    %302 = vmatprep.subr.mxu0 0.0
    %303 = vmatpush1.msra.mxu0 0.0
    %304 = vmatprep.subr.mxu0 0.0
    %305 = vmatpush1.msra.mxu0 0.0
    %306 = vmatprep.subr.mxu0 0.0
    %307 = vmatpush1.msra.mxu0 0.0
    %308 = vmatprep.subr.mxu0 0.0
    %309 = vmatpush1.msra.mxu0 0.0
    %310 = vmatprep.subr.mxu0 0.0
    %311 = vmatpush1.msra.mxu0 0.0
    %312 = vmatprep.subr.mxu0 0.0
    %313 = vmatpush1.msra.mxu0 0.0
    %314 = vmatprep.subr.mxu0 0.0
    %315 = vmatpush1.msra.mxu0 0.0
    %316 = vmatprep.subr.mxu0 0.0
    %317 = vmatpush1.msra.mxu0 0.0
    %318 = vmatprep.subr.mxu0 0.0
    %319 = vmatpush1.msra.mxu0 0.0
    %320 = vmatprep.subr.mxu0 0.0
    %321 = vmatpush1.msra.mxu0 0.0
    %322 = vmatprep.subr.mxu0 0.0
    %323 = vmatpush1.msra.mxu0 0.0
    %324 = vmatprep.subr.mxu0 0.0
    %325 = vmatpush1.msra.mxu0 0.0
    %326 = vmatprep.subr.mxu0 0.0
    %327 = vmatpush1.msra.mxu0 0.0
    %328 = vmatprep.subr.mxu0 0.0
    %329 = vmatpush1.msra.mxu0 0.0
    %330 = vmatprep.subr.mxu0 0.0
    %331 = vmatpush1.msra.mxu0 0.0
    %332 = vmatprep.subr.mxu0 0.0
    %333 = vmatpush1.msra.mxu0 0.0
    %334 = vmatprep.subr.mxu0 0.0
    %335 = vmatpush1.msra.mxu0 0.0
    %336 = vmatprep.subr.mxu0 0.0
    %337 = vmatpush1.msra.mxu0 0.0
    %338 = vmatprep.subr.mxu0 0.0
    %339 = vmatpush1.msra.mxu0 0.0
    %340 = vmatprep.subr.mxu0 0.0
    %341 = vmatpush1.msra.mxu0 0.0
    %342 = vmatprep.mubr.f32.mxu0 0.0
    %343 = vmatmul.mubr.f32.gmra.mrb[0].mxu0 %v267
    %v344 = vpop.f32.mrb[0].mxu0
    %v345 = vadd.f32 %v249, %v344
    %v346 = vpop.f32.mrb[0].mxu0
    %347 = vmatprep.mubr.f32.mxu0 0.0
    %348 = vmatmul.mubr.f32.gmra.mrb[0].mxu0 %v269
    %v349 = vpop.f32.mrb[0].mxu0
    %v350 = vadd.f32 %v254, %v349
    %v351 = vpop.f32.mrb[0].mxu0
    %352 = vmatprep.mubr.f32.mxu0 0.0
    %353 = vmatmul.mubr.f32.gmra.mrb[0].mxu0 %v271
    %v354 = vpop.f32.mrb[0].mxu0
    %v355 = vadd.f32 %v259, %v354
    %v356 = vpop.f32.mrb[0].mxu0
    %357 = vmatprep.mubr.f32.mxu0 0.0
    %358 = vmatmul.mubr.f32.gmra.mrb[0].mxu0 %v273
    %v359 = vpop.f32.mrb[0].mxu0
    %v360 = vadd.f32 %v264, %v359
    %v361 = vpop.f32.mrb[0].mxu0
    %362 = vdwg.mxu0
    %s363 = scalar_lea.vmem %s1, 48
    %v364 = vld [vmem:[%s363] sm:$0xff]
    %v365 = vld [vmem:[%s363 + $0x8] sm:$0xff]
    %v366 = vld [vmem:[%s363 + $0x10] sm:$0x3]
    %v368 = vsel %vm165, %v154, 0
    %v371 = vsel %vm165, %v155, 0
    %v374 = vsel %vm165, %v156, 0
    %v377 = vsel %vm165, %v157, 0
    %v380 = vsel %vm178, %v366, 0
    %382 = vmatprep.subr.mxu0 0.0
    %383 = vmatpush1.msra.mxu0 %v364
    %384 = vmatprep.subr.mxu0 0.0
    %385 = vmatpush1.msra.mxu0 %v365
    %386 = vmatprep.subr.mxu0 0.0
    %387 = vmatpush1.msra.mxu0 %v380
    %388 = vmatprep.subr.mxu0 0.0
    %389 = vmatpush1.msra.mxu0 0.0
    %390 = vmatprep.subr.mxu0 0.0
    %391 = vmatpush1.msra.mxu0 0.0
    %392 = vmatprep.subr.mxu0 0.0
    %393 = vmatpush1.msra.mxu0 0.0
    %394 = vmatprep.subr.mxu0 0.0
    %395 = vmatpush1.msra.mxu0 0.0
    %396 = vmatprep.subr.mxu0 0.0
    %397 = vmatpush1.msra.mxu0 0.0
    %398 = vmatprep.subr.mxu0 0.0
    %399 = vmatpush1.msra.mxu0 0.0
    %400 = vmatprep.subr.mxu0 0.0
    %401 = vmatpush1.msra.mxu0 0.0
    %402 = vmatprep.subr.mxu0 0.0
    %403 = vmatpush1.msra.mxu0 0.0
    %404 = vmatprep.subr.mxu0 0.0
    %405 = vmatpush1.msra.mxu0 0.0
    %406 = vmatprep.subr.mxu0 0.0
    %407 = vmatpush1.msra.mxu0 0.0
    %408 = vmatprep.subr.mxu0 0.0
    %409 = vmatpush1.msra.mxu0 0.0
    %410 = vmatprep.subr.mxu0 0.0
    %411 = vmatpush1.msra.mxu0 0.0
    %412 = vmatprep.subr.mxu0 0.0
    %413 = vmatpush1.msra.mxu0 0.0
    %414 = vmatprep.subr.mxu0 0.0
    %415 = vmatpush1.msra.mxu0 0.0
    %416 = vmatprep.subr.mxu0 0.0
    %417 = vmatpush1.msra.mxu0 0.0
    %418 = vmatprep.subr.mxu0 0.0
    %419 = vmatpush1.msra.mxu0 0.0
    %420 = vmatprep.subr.mxu0 0.0
    %421 = vmatpush1.msra.mxu0 0.0
    %422 = vmatprep.subr.mxu0 0.0
    %423 = vmatpush1.msra.mxu0 0.0
    %424 = vmatprep.subr.mxu0 0.0
    %425 = vmatpush1.msra.mxu0 0.0
    %426 = vmatprep.subr.mxu0 0.0
    %427 = vmatpush1.msra.mxu0 0.0
    %428 = vmatprep.subr.mxu0 0.0
    %429 = vmatpush1.msra.mxu0 0.0
    %430 = vmatprep.subr.mxu0 0.0
    %431 = vmatpush1.msra.mxu0 0.0
    %432 = vmatprep.subr.mxu0 0.0
    %433 = vmatpush1.msra.mxu0 0.0
    %434 = vmatprep.subr.mxu0 0.0
    %435 = vmatpush1.msra.mxu0 0.0
    %436 = vmatprep.subr.mxu0 0.0
    %437 = vmatpush1.msra.mxu0 0.0
    %438 = vmatprep.subr.mxu0 0.0
    %439 = vmatpush1.msra.mxu0 0.0
    %440 = vmatprep.subr.mxu0 0.0
    %441 = vmatpush1.msra.mxu0 0.0
    %442 = vmatprep.subr.mxu0 0.0
    %443 = vmatpush1.msra.mxu0 0.0
    %444 = vmatprep.subr.mxu0 0.0
    %445 = vmatpush1.msra.mxu0 0.0
    %446 = vmatprep.mubr.f32.mxu0 0.0
    %447 = vmatmul.mubr.f32.gmra.mrb[0].mxu0 %v368
    %v448 = vpop.f32.mrb[0].mxu0
    %v449 = vadd.f32 0.0, %v448
    %v450 = vpop.f32.mrb[0].mxu0
    %451 = vmatprep.mubr.f32.mxu0 0.0
    %452 = vmatmul.mubr.f32.gmra.mrb[0].mxu0 %v371
    %v453 = vpop.f32.mrb[0].mxu0
    %v454 = vadd.f32 0.0, %v453
    %v455 = vpop.f32.mrb[0].mxu0
    %456 = vmatprep.mubr.f32.mxu0 0.0
    %457 = vmatmul.mubr.f32.gmra.mrb[0].mxu0 %v374
    %v458 = vpop.f32.mrb[0].mxu0
    %v459 = vadd.f32 0.0, %v458
    %v460 = vpop.f32.mrb[0].mxu0
    %461 = vmatprep.mubr.f32.mxu0 0.0
    %462 = vmatmul.mubr.f32.gmra.mrb[0].mxu0 %v377
    %v463 = vpop.f32.mrb[0].mxu0
    %v464 = vadd.f32 0.0, %v463
    %v465 = vpop.f32.mrb[0].mxu0
    %466 = vdwg.mxu0
    %v467 = vadd.f32 %v345, %v449
    %v468 = vadd.f32 %v350, %v454
    %v469 = vadd.f32 %v355, %v459
    %v470 = vadd.f32 %v360, %v464
    %v471 = vlaneseq
    %v472 = vshrl.u32 %v471, 7
    %v473 = vsub.s32 0, %v472
    %v474 = vrot.slane %v99, %v473
    %v475 = vadd.f32 %v467, %v474
    %v476 = vadd.f32 %v468, %v474
    %v477 = vadd.f32 %v469, %v474
    %v478 = vadd.f32 %v470, %v474
    %v479 = vmax.f32 %v475, 0.0
    %v480 = vmax.f32 %v476, 0.0
    %v481 = vmax.f32 %v477, 0.0
    %v482 = vmax.f32 %v478, 0.0
    %v487 = vrot.slane %v479, 7
    %v488 = vrot.slane %v480, 7
    %v489 = vsel %vm108, %v487, %v488
    %v490 = vrot.slane %v481, 7
    %v491 = vsel %vm108, %v488, %v490
    %v492 = vrot.slane %v482, 7
    %v493 = vsel %vm108, %v490, %v492
    %v498 = vsel %vm108, 0.0, %v487
    %v499 = vsel %vm125, %v498, 0.0
    %v500 = vsel %vm126, %v489, 0.0
    %v501 = vsel %vm127, %v491, 0.0
    %v502 = vsel %vm128, %v493, 0.0
    %v503 = vrot.slane %v479, 1
    %v504 = vrot.slane %v480, 1
    %v505 = vsel %vm133, %v503, %v504
    %v506 = vrot.slane %v481, 1
    %v507 = vsel %vm133, %v504, %v506
    %v508 = vrot.slane %v482, 1
    %v509 = vsel %vm133, %v506, %v508
    %v514 = vsel %vm133, %v508, 0.0
    %v515 = vsel %vm150, %v505, 0.0
    %v516 = vsel %vm151, %v507, 0.0
    %v517 = vsel %vm152, %v509, 0.0
    %v518 = vsel %vm153, %v514, 0.0
    %s519 = scalar_lea.vmem [#allocation2], 96
    %v520 = vld [vmem:[%s519] sm:$0xff]
    %v521 = vld [vmem:[%s519 + $0x8] sm:$0xff]
    %v522 = vld [vmem:[%s519 + $0x10] sm:$0xff]
    %v523 = vld [vmem:[%s519 + $0x18] sm:$0xff]
    %v524 = vld [vmem:[%s519 + $0x20] sm:$0xff]
    %v525 = vld [vmem:[%s519 + $0x28] sm:$0xff]
    %v526 = vld [vmem:[%s519 + $0x30] sm:$0xff]
    %v527 = vld [vmem:[%s519 + $0x38] sm:$0xff]
    %v528 = vld [vmem:[%s519 + $0x40] sm:$0xff]
    %v529 = vld [vmem:[%s519 + $0x48] sm:$0xff]
    %v530 = vld [vmem:[%s519 + $0x50] sm:$0xff]
    %v531 = vld [vmem:[%s519 + $0x58] sm:$0xff]
    %v532 = vld [vmem:[#allocation2] sm:$0xff]
    %v533 = vld [vmem:[#allocation2 + $0x8] sm:$0xff]
    %v534 = vld [vmem:[#allocation2 + $0x10] sm:$0xff]
    %v535 = vld [vmem:[#allocation2 + $0x18] sm:$0xff]
    %v536 = vld [vmem:[#allocation2 + $0x20] sm:$0xff]
    %v537 = vld [vmem:[#allocation2 + $0x28] sm:$0xff]
    %v538 = vld [vmem:[#allocation2 + $0x30] sm:$0xff]
    %v539 = vld [vmem:[#allocation2 + $0x38] sm:$0xff]
    %v540 = vld [vmem:[#allocation2 + $0x40] sm:$0xff]
    %v541 = vld [vmem:[#allocation2 + $0x48] sm:$0xff]
    %v542 = vld [vmem:[#allocation2 + $0x50] sm:$0xff]
    %v543 = vld [vmem:[#allocation2 + $0x58] sm:$0xff]
    %vm544 = vcmask 785408
    %v546 = vsel %vm544, %v499, 0
    %v549 = vsel %vm544, %v500, 0
    %v552 = vsel %vm544, %v501, 0
    %v555 = vsel %vm544, %v502, 0
    %557 = vmatprep.subr.mxu0 0.0
    %558 = vmatpush1.msra.mxu0 %v532
    %559 = vmatprep.subr.mxu0 0.0
    %560 = vmatpush1.msra.mxu0 %v533
    %561 = vmatprep.subr.mxu0 0.0
    %562 = vmatpush1.msra.mxu0 %v534
    %563 = vmatprep.subr.mxu0 0.0
    %564 = vmatpush1.msra.mxu0 %v535
    %565 = vmatprep.subr.mxu0 0.0
    %566 = vmatpush1.msra.mxu0 %v536
    %567 = vmatprep.subr.mxu0 0.0
    %568 = vmatpush1.msra.mxu0 %v537
    %569 = vmatprep.subr.mxu0 0.0
    %570 = vmatpush1.msra.mxu0 %v538
    %571 = vmatprep.subr.mxu0 0.0
    %572 = vmatpush1.msra.mxu0 %v539
    %573 = vmatprep.subr.mxu0 0.0
    %574 = vmatpush1.msra.mxu0 %v540
    %575 = vmatprep.subr.mxu0 0.0
    %576 = vmatpush1.msra.mxu0 %v541
    %577 = vmatprep.subr.mxu0 0.0
    %578 = vmatpush1.msra.mxu0 %v542
    %579 = vmatprep.subr.mxu0 0.0
    %580 = vmatpush1.msra.mxu0 %v543
    %581 = vmatprep.subr.mxu0 0.0
    %582 = vmatpush1.msra.mxu0 0.0
    %583 = vmatprep.subr.mxu0 0.0
    %584 = vmatpush1.msra.mxu0 0.0
    %585 = vmatprep.subr.mxu0 0.0
    %586 = vmatpush1.msra.mxu0 0.0
    %587 = vmatprep.subr.mxu0 0.0
    %588 = vmatpush1.msra.mxu0 0.0
    %589 = vmatprep.subr.mxu0 0.0
    %590 = vmatpush1.msra.mxu0 0.0
    %591 = vmatprep.subr.mxu0 0.0
    %592 = vmatpush1.msra.mxu0 0.0
    %593 = vmatprep.subr.mxu0 0.0
    %594 = vmatpush1.msra.mxu0 0.0
    %595 = vmatprep.subr.mxu0 0.0
    %596 = vmatpush1.msra.mxu0 0.0
    %597 = vmatprep.subr.mxu0 0.0
    %598 = vmatpush1.msra.mxu0 0.0
    %599 = vmatprep.subr.mxu0 0.0
    %600 = vmatpush1.msra.mxu0 0.0
    %601 = vmatprep.subr.mxu0 0.0
    %602 = vmatpush1.msra.mxu0 0.0
    %603 = vmatprep.subr.mxu0 0.0
    %604 = vmatpush1.msra.mxu0 0.0
    %605 = vmatprep.subr.mxu0 0.0
    %606 = vmatpush1.msra.mxu0 0.0
    %607 = vmatprep.subr.mxu0 0.0
    %608 = vmatpush1.msra.mxu0 0.0
    %609 = vmatprep.subr.mxu0 0.0
    %610 = vmatpush1.msra.mxu0 0.0
    %611 = vmatprep.subr.mxu0 0.0
    %612 = vmatpush1.msra.mxu0 0.0
    %613 = vmatprep.subr.mxu0 0.0
    %614 = vmatpush1.msra.mxu0 0.0
    %615 = vmatprep.subr.mxu0 0.0
    %616 = vmatpush1.msra.mxu0 0.0
    %617 = vmatprep.subr.mxu0 0.0
    %618 = vmatpush1.msra.mxu0 0.0
    %619 = vmatprep.subr.mxu0 0.0
    %620 = vmatpush1.msra.mxu0 0.0
    %621 = vmatprep.mubr.f32.mxu0 0.0
    %622 = vmatmul.mubr.f32.gmra.mrb[0].mxu0 %v546
    %v623 = vpop.f32.mrb[0].mxu0
    %v624 = vadd.f32 0.0, %v623
    %v625 = vpop.f32.mrb[0].mxu0
    %626 = vmatprep.mubr.f32.mxu0 0.0
    %627 = vmatmul.mubr.f32.gmra.mrb[0].mxu0 %v549
    %v628 = vpop.f32.mrb[0].mxu0
    %v629 = vadd.f32 0.0, %v628
    %v630 = vpop.f32.mrb[0].mxu0
    %631 = vmatprep.mubr.f32.mxu0 0.0
    %632 = vmatmul.mubr.f32.gmra.mrb[0].mxu0 %v552
    %v633 = vpop.f32.mrb[0].mxu0
    %v634 = vadd.f32 0.0, %v633
    %v635 = vpop.f32.mrb[0].mxu0
    %636 = vmatprep.mubr.f32.mxu0 0.0
    %637 = vmatmul.mubr.f32.gmra.mrb[0].mxu0 %v555
    %v638 = vpop.f32.mrb[0].mxu0
    %v639 = vadd.f32 0.0, %v638
    %v640 = vpop.f32.mrb[0].mxu0
    %641 = vdwg.mxu0
    %v642 = vsel %vm544, %v479, 0
    %v644 = vsel %vm544, %v480, 0
    %v646 = vsel %vm544, %v481, 0
    %v648 = vsel %vm544, %v482, 0
    %650 = vmatprep.subr.mxu0 0.0
    %651 = vmatpush1.msra.mxu0 %v520
    %652 = vmatprep.subr.mxu0 0.0
    %653 = vmatpush1.msra.mxu0 %v521
    %654 = vmatprep.subr.mxu0 0.0
    %655 = vmatpush1.msra.mxu0 %v522
    %656 = vmatprep.subr.mxu0 0.0
    %657 = vmatpush1.msra.mxu0 %v523
    %658 = vmatprep.subr.mxu0 0.0
    %659 = vmatpush1.msra.mxu0 %v524
    %660 = vmatprep.subr.mxu0 0.0
    %661 = vmatpush1.msra.mxu0 %v525
    %662 = vmatprep.subr.mxu0 0.0
    %663 = vmatpush1.msra.mxu0 %v526
    %664 = vmatprep.subr.mxu0 0.0
    %665 = vmatpush1.msra.mxu0 %v527
    %666 = vmatprep.subr.mxu0 0.0
    %667 = vmatpush1.msra.mxu0 %v528
    %668 = vmatprep.subr.mxu0 0.0
    %669 = vmatpush1.msra.mxu0 %v529
    %670 = vmatprep.subr.mxu0 0.0
    %671 = vmatpush1.msra.mxu0 %v530
    %672 = vmatprep.subr.mxu0 0.0
    %673 = vmatpush1.msra.mxu0 %v531
    %674 = vmatprep.subr.mxu0 0.0
    %675 = vmatpush1.msra.mxu0 0.0
    %676 = vmatprep.subr.mxu0 0.0
    %677 = vmatpush1.msra.mxu0 0.0
    %678 = vmatprep.subr.mxu0 0.0
    %679 = vmatpush1.msra.mxu0 0.0
    %680 = vmatprep.subr.mxu0 0.0
    %681 = vmatpush1.msra.mxu0 0.0
    %682 = vmatprep.subr.mxu0 0.0
    %683 = vmatpush1.msra.mxu0 0.0
    %684 = vmatprep.subr.mxu0 0.0
    %685 = vmatpush1.msra.mxu0 0.0
    %686 = vmatprep.subr.mxu0 0.0
    %687 = vmatpush1.msra.mxu0 0.0
    %688 = vmatprep.subr.mxu0 0.0
    %689 = vmatpush1.msra.mxu0 0.0
    %690 = vmatprep.subr.mxu0 0.0
    %691 = vmatpush1.msra.mxu0 0.0
    %692 = vmatprep.subr.mxu0 0.0
    %693 = vmatpush1.msra.mxu0 0.0
    %694 = vmatprep.subr.mxu0 0.0
    %695 = vmatpush1.msra.mxu0 0.0
    %696 = vmatprep.subr.mxu0 0.0
    %697 = vmatpush1.msra.mxu0 0.0
    %698 = vmatprep.subr.mxu0 0.0
    %699 = vmatpush1.msra.mxu0 0.0
    %700 = vmatprep.subr.mxu0 0.0
    %701 = vmatpush1.msra.mxu0 0.0
    %702 = vmatprep.subr.mxu0 0.0
    %703 = vmatpush1.msra.mxu0 0.0
    %704 = vmatprep.subr.mxu0 0.0
    %705 = vmatpush1.msra.mxu0 0.0
    %706 = vmatprep.subr.mxu0 0.0
    %707 = vmatpush1.msra.mxu0 0.0
    %708 = vmatprep.subr.mxu0 0.0
    %709 = vmatpush1.msra.mxu0 0.0
    %710 = vmatprep.subr.mxu0 0.0
    %711 = vmatpush1.msra.mxu0 0.0
    %712 = vmatprep.subr.mxu0 0.0
    %713 = vmatpush1.msra.mxu0 0.0
    %714 = vmatprep.mubr.f32.mxu0 0.0
    %715 = vmatmul.mubr.f32.gmra.mrb[0].mxu0 %v642
    %v716 = vpop.f32.mrb[0].mxu0
    %v717 = vadd.f32 %v624, %v716
    %v718 = vpop.f32.mrb[0].mxu0
    %719 = vmatprep.mubr.f32.mxu0 0.0
    %720 = vmatmul.mubr.f32.gmra.mrb[0].mxu0 %v644
    %v721 = vpop.f32.mrb[0].mxu0
    %v722 = vadd.f32 %v629, %v721
    %v723 = vpop.f32.mrb[0].mxu0
    %724 = vmatprep.mubr.f32.mxu0 0.0
    %725 = vmatmul.mubr.f32.gmra.mrb[0].mxu0 %v646
    %v726 = vpop.f32.mrb[0].mxu0
    %v727 = vadd.f32 %v634, %v726
    %v728 = vpop.f32.mrb[0].mxu0
    %729 = vmatprep.mubr.f32.mxu0 0.0
    %730 = vmatmul.mubr.f32.gmra.mrb[0].mxu0 %v648
    %v731 = vpop.f32.mrb[0].mxu0
    %v732 = vadd.f32 %v639, %v731
    %v733 = vpop.f32.mrb[0].mxu0
    %734 = vdwg.mxu0
    %s735 = scalar_lea.vmem [#allocation2], 192
    %v736 = vld [vmem:[%s735] sm:$0xff]
    %v737 = vld [vmem:[%s735 + $0x8] sm:$0xff]
    %v738 = vld [vmem:[%s735 + $0x10] sm:$0xff]
    %v739 = vld [vmem:[%s735 + $0x18] sm:$0xff]
    %v740 = vld [vmem:[%s735 + $0x20] sm:$0xff]
    %v741 = vld [vmem:[%s735 + $0x28] sm:$0xff]
    %v742 = vld [vmem:[%s735 + $0x30] sm:$0xff]
    %v743 = vld [vmem:[%s735 + $0x38] sm:$0xff]
    %v744 = vld [vmem:[%s735 + $0x40] sm:$0xff]
    %v745 = vld [vmem:[%s735 + $0x48] sm:$0xff]
    %v746 = vld [vmem:[%s735 + $0x50] sm:$0xff]
    %v747 = vld [vmem:[%s735 + $0x58] sm:$0xff]
    %v749 = vsel %vm544, %v515, 0
    %v752 = vsel %vm544, %v516, 0
    %v755 = vsel %vm544, %v517, 0
    %v758 = vsel %vm544, %v518, 0
    %760 = vmatprep.subr.mxu0 0.0
    %761 = vmatpush1.msra.mxu0 %v736
    %762 = vmatprep.subr.mxu0 0.0
    %763 = vmatpush1.msra.mxu0 %v737
    %764 = vmatprep.subr.mxu0 0.0
    %765 = vmatpush1.msra.mxu0 %v738
    %766 = vmatprep.subr.mxu0 0.0
    %767 = vmatpush1.msra.mxu0 %v739
    %768 = vmatprep.subr.mxu0 0.0
    %769 = vmatpush1.msra.mxu0 %v740
    %770 = vmatprep.subr.mxu0 0.0
    %771 = vmatpush1.msra.mxu0 %v741
    %772 = vmatprep.subr.mxu0 0.0
    %773 = vmatpush1.msra.mxu0 %v742
    %774 = vmatprep.subr.mxu0 0.0
    %775 = vmatpush1.msra.mxu0 %v743
    %776 = vmatprep.subr.mxu0 0.0
    %777 = vmatpush1.msra.mxu0 %v744
    %778 = vmatprep.subr.mxu0 0.0
    %779 = vmatpush1.msra.mxu0 %v745
    %780 = vmatprep.subr.mxu0 0.0
    %781 = vmatpush1.msra.mxu0 %v746
    %782 = vmatprep.subr.mxu0 0.0
    %783 = vmatpush1.msra.mxu0 %v747
    %784 = vmatprep.subr.mxu0 0.0
    %785 = vmatpush1.msra.mxu0 0.0
    %786 = vmatprep.subr.mxu0 0.0
    %787 = vmatpush1.msra.mxu0 0.0
    %788 = vmatprep.subr.mxu0 0.0
    %789 = vmatpush1.msra.mxu0 0.0
    %790 = vmatprep.subr.mxu0 0.0
    %791 = vmatpush1.msra.mxu0 0.0
    %792 = vmatprep.subr.mxu0 0.0
    %793 = vmatpush1.msra.mxu0 0.0
    %794 = vmatprep.subr.mxu0 0.0
    %795 = vmatpush1.msra.mxu0 0.0
    %796 = vmatprep.subr.mxu0 0.0
    %797 = vmatpush1.msra.mxu0 0.0
    %798 = vmatprep.subr.mxu0 0.0
    %799 = vmatpush1.msra.mxu0 0.0
    %800 = vmatprep.subr.mxu0 0.0
    %801 = vmatpush1.msra.mxu0 0.0
    %802 = vmatprep.subr.mxu0 0.0
    %803 = vmatpush1.msra.mxu0 0.0
    %804 = vmatprep.subr.mxu0 0.0
    %805 = vmatpush1.msra.mxu0 0.0
    %806 = vmatprep.subr.mxu0 0.0
    %807 = vmatpush1.msra.mxu0 0.0
    %808 = vmatprep.subr.mxu0 0.0
    %809 = vmatpush1.msra.mxu0 0.0
    %810 = vmatprep.subr.mxu0 0.0
    %811 = vmatpush1.msra.mxu0 0.0
    %812 = vmatprep.subr.mxu0 0.0
    %813 = vmatpush1.msra.mxu0 0.0
    %814 = vmatprep.subr.mxu0 0.0
    %815 = vmatpush1.msra.mxu0 0.0
    %816 = vmatprep.subr.mxu0 0.0
    %817 = vmatpush1.msra.mxu0 0.0
    %818 = vmatprep.subr.mxu0 0.0
    %819 = vmatpush1.msra.mxu0 0.0
    %820 = vmatprep.subr.mxu0 0.0
    %821 = vmatpush1.msra.mxu0 0.0
    %822 = vmatprep.subr.mxu0 0.0
    %823 = vmatpush1.msra.mxu0 0.0
    %824 = vmatprep.mubr.f32.mxu0 0.0
    %825 = vmatmul.mubr.f32.gmra.mrb[0].mxu0 %v749
    %v826 = vpop.f32.mrb[0].mxu0
    %v827 = vadd.f32 0.0, %v826
    %v828 = vpop.f32.mrb[0].mxu0
    %829 = vmatprep.mubr.f32.mxu0 0.0
    %830 = vmatmul.mubr.f32.gmra.mrb[0].mxu0 %v752
    %v831 = vpop.f32.mrb[0].mxu0
    %v832 = vadd.f32 0.0, %v831
    %v833 = vpop.f32.mrb[0].mxu0
    %834 = vmatprep.mubr.f32.mxu0 0.0
    %835 = vmatmul.mubr.f32.gmra.mrb[0].mxu0 %v755
    %v836 = vpop.f32.mrb[0].mxu0
    %v837 = vadd.f32 0.0, %v836
    %v838 = vpop.f32.mrb[0].mxu0
    %839 = vmatprep.mubr.f32.mxu0 0.0
    %840 = vmatmul.mubr.f32.gmra.mrb[0].mxu0 %v758
    %v841 = vpop.f32.mrb[0].mxu0
    %v842 = vadd.f32 0.0, %v841
    %v843 = vpop.f32.mrb[0].mxu0
    %844 = vdwg.mxu0
    %v845 = vadd.f32 %v717, %v827
    %v846 = vadd.f32 %v722, %v832
    %v847 = vadd.f32 %v727, %v837
    %v848 = vadd.f32 %v732, %v842
    %v849 = vlaneseq
    %v850 = vshrl.u32 %v849, 7
    %v851 = vsub.s32 1, %v850
    %v852 = vrot.slane %v99, %v851
    %v853 = vadd.f32 %v845, %v852
    %v854 = vadd.f32 %v846, %v852
    %v855 = vadd.f32 %v847, %v852
    %v856 = vadd.f32 %v848, %v852
    %v857 = vmax.f32 %v853, 0.0
    %v858 = vmax.f32 %v854, 0.0
    %v859 = vmax.f32 %v855, 0.0
    %v860 = vmax.f32 %v856, 0.0
    %v861 = vsel %vm544, %v857, 0.0
    %v862 = vsel %vm544, %v858, 0.0
    %v863 = vadd.f32 %v861, %v862
    %v864 = vrot.slane %v863, 4
    %v865 = vadd.f32 %v863, %v864
    %v866 = vrot.slane %v865, 2
    %v867 = vadd.f32 %v865, %v866
    %v868 = vrot.slane %v867, 1
    %v869 = vadd.f32 %v867, %v868
    %v870 = vsel %vm544, %v859, 0.0
    %v871 = vsel %vm544, %v860, 0.0
    %v872 = vadd.f32 %v870, %v871
    %v873 = vrot.slane %v872, 4
    %v874 = vadd.f32 %v872, %v873
    %v875 = vrot.slane %v874, 2
    %v876 = vadd.f32 %v874, %v875
    %v877 = vrot.slane %v876, 1
    %v878 = vadd.f32 %v876, %v877
    %v879 = vrcp.pop 16.0
    %v880 = vmul.f32 %v869, %v879
    %v881 = vmul.f32 %v878, %v879
    %v882 = vld [vmem:[%s3] sm:$0xff]
    %v883 = vld [vmem:[%s3 + $0x8] sm:$0xff]
    %v884 = vld [vmem:[%s3 + $0x10] sm:$0xff]
    %v885 = vld [vmem:[%s3 + $0x18] sm:$0xff]
    %v886 = vld [vmem:[%s3 + $0x20] sm:$0xff]
    %v887 = vld [vmem:[%s3 + $0x28] sm:$0xff]
    %v888 = vld [vmem:[%s3 + $0x30] sm:$0xff]
    %v889 = vld [vmem:[%s3 + $0x38] sm:$0xff]
    %v890 = vld [vmem:[%s3 + $0x40] sm:$0xff]
    %v891 = vld [vmem:[%s3 + $0x48] sm:$0xff]
    %v892 = vld [vmem:[%s3 + $0x50] sm:$0xff]
    %v893 = vld [vmem:[%s3 + $0x58] sm:$0xff]
    %v894 = vlaneseq
    %v895 = vshrl.u32 %v894, 7
    %v896 = vsub.s32 2, %v895
    %v897 = vrot.slane %v99, %v896
    %vm900 = vcmask 1041409
    %v901 = vsel %vm900, %v881, %v880
    %v902 = vsel %vm544, %v901, 0
    %904 = vmatprep.subr.mxu0 0.0
    %905 = vmatpush1.msra.mxu0 %v882
    %906 = vmatprep.subr.mxu0 0.0
    %907 = vmatpush1.msra.mxu0 %v883
    %908 = vmatprep.subr.mxu0 0.0
    %909 = vmatpush1.msra.mxu0 %v884
    %910 = vmatprep.subr.mxu0 0.0
    %911 = vmatpush1.msra.mxu0 %v885
    %912 = vmatprep.subr.mxu0 0.0
    %913 = vmatpush1.msra.mxu0 %v886
    %914 = vmatprep.subr.mxu0 0.0
    %915 = vmatpush1.msra.mxu0 %v887
    %916 = vmatprep.subr.mxu0 0.0
    %917 = vmatpush1.msra.mxu0 %v888
    %918 = vmatprep.subr.mxu0 0.0
    %919 = vmatpush1.msra.mxu0 %v889
    %920 = vmatprep.subr.mxu0 0.0
    %921 = vmatpush1.msra.mxu0 %v890
    %922 = vmatprep.subr.mxu0 0.0
    %923 = vmatpush1.msra.mxu0 %v891
    %924 = vmatprep.subr.mxu0 0.0
    %925 = vmatpush1.msra.mxu0 %v892
    %926 = vmatprep.subr.mxu0 0.0
    %927 = vmatpush1.msra.mxu0 %v893
    %928 = vmatprep.subr.mxu0 0.0
    %929 = vmatpush1.msra.mxu0 0.0
    %930 = vmatprep.subr.mxu0 0.0
    %931 = vmatpush1.msra.mxu0 0.0
    %932 = vmatprep.subr.mxu0 0.0
    %933 = vmatpush1.msra.mxu0 0.0
    %934 = vmatprep.subr.mxu0 0.0
    %935 = vmatpush1.msra.mxu0 0.0
    %936 = vmatprep.subr.mxu0 0.0
    %937 = vmatpush1.msra.mxu0 0.0
    %938 = vmatprep.subr.mxu0 0.0
    %939 = vmatpush1.msra.mxu0 0.0
    %940 = vmatprep.subr.mxu0 0.0
    %941 = vmatpush1.msra.mxu0 0.0
    %942 = vmatprep.subr.mxu0 0.0
    %943 = vmatpush1.msra.mxu0 0.0
    %944 = vmatprep.subr.mxu0 0.0
    %945 = vmatpush1.msra.mxu0 0.0
    %946 = vmatprep.subr.mxu0 0.0
    %947 = vmatpush1.msra.mxu0 0.0
    %948 = vmatprep.subr.mxu0 0.0
    %949 = vmatpush1.msra.mxu0 0.0
    %950 = vmatprep.subr.mxu0 0.0
    %951 = vmatpush1.msra.mxu0 0.0
    %952 = vmatprep.subr.mxu0 0.0
    %953 = vmatpush1.msra.mxu0 0.0
    %954 = vmatprep.subr.mxu0 0.0
    %955 = vmatpush1.msra.mxu0 0.0
    %956 = vmatprep.subr.mxu0 0.0
    %957 = vmatpush1.msra.mxu0 0.0
    %958 = vmatprep.subr.mxu0 0.0
    %959 = vmatpush1.msra.mxu0 0.0
    %960 = vmatprep.subr.mxu0 0.0
    %961 = vmatpush1.msra.mxu0 0.0
    %962 = vmatprep.subr.mxu0 0.0
    %963 = vmatpush1.msra.mxu0 0.0
    %964 = vmatprep.subr.mxu0 0.0
    %965 = vmatpush1.msra.mxu0 0.0
    %966 = vmatprep.subr.mxu0 0.0
    %967 = vmatpush1.msra.mxu0 0.0
    %968 = vmatprep.mubr.f32.mxu0 0.0
    %969 = vmatmul.mubr.f32.gmra.mrb[0].mxu0 %v902
    %v970 = vpop.f32.mrb[0].mxu0
    %v971 = vadd.f32 %v897, %v970
    %v972 = vpop.f32.mrb[0].mxu0
    %973 = vdwg.mxu0
    %v974 = vmax.f32 %v971, 0.0
    %v975 = vld [vmem:[%s4] sm:$0xff]
    %v976 = vld [vmem:[%s4 + $0x8] sm:$0xff]
    %v977 = vld [vmem:[%s4 + $0x10] sm:$0xff]
    %v978 = vld [vmem:[%s4 + $0x18] sm:$0xff]
    %v979 = vlaneseq
    %v980 = vshrl.u32 %v979, 7
    %v981 = vsub.s32 3, %v980
    %v982 = vrot.slane %v99, %v981
    %vm983 = vcmask 261120
    %v985 = vsel %vm983, %v974, 0
    %987 = vmatprep.subr.mxu0 0.0
    %988 = vmatpush1.msra.mxu0 %v975
    %989 = vmatprep.subr.mxu0 0.0
    %990 = vmatpush1.msra.mxu0 %v976
    %991 = vmatprep.subr.mxu0 0.0
    %992 = vmatpush1.msra.mxu0 %v977
    %993 = vmatprep.subr.mxu0 0.0
    %994 = vmatpush1.msra.mxu0 %v978
    %995 = vmatprep.subr.mxu0 0.0
    %996 = vmatpush1.msra.mxu0 0.0
    %997 = vmatprep.subr.mxu0 0.0
    %998 = vmatpush1.msra.mxu0 0.0
    %999 = vmatprep.subr.mxu0 0.0
    %1000 = vmatpush1.msra.mxu0 0.0
    %1001 = vmatprep.subr.mxu0 0.0
    %1002 = vmatpush1.msra.mxu0 0.0
    %1003 = vmatprep.subr.mxu0 0.0
    %1004 = vmatpush1.msra.mxu0 0.0
    %1005 = vmatprep.subr.mxu0 0.0
    %1006 = vmatpush1.msra.mxu0 0.0
    %1007 = vmatprep.subr.mxu0 0.0
    %1008 = vmatpush1.msra.mxu0 0.0
    %1009 = vmatprep.subr.mxu0 0.0
    %1010 = vmatpush1.msra.mxu0 0.0
    %1011 = vmatprep.subr.mxu0 0.0
    %1012 = vmatpush1.msra.mxu0 0.0
    %1013 = vmatprep.subr.mxu0 0.0
    %1014 = vmatpush1.msra.mxu0 0.0
    %1015 = vmatprep.subr.mxu0 0.0
    %1016 = vmatpush1.msra.mxu0 0.0
    %1017 = vmatprep.subr.mxu0 0.0
    %1018 = vmatpush1.msra.mxu0 0.0
    %1019 = vmatprep.subr.mxu0 0.0
    %1020 = vmatpush1.msra.mxu0 0.0
    %1021 = vmatprep.subr.mxu0 0.0
    %1022 = vmatpush1.msra.mxu0 0.0
    %1023 = vmatprep.subr.mxu0 0.0
    %1024 = vmatpush1.msra.mxu0 0.0
    %1025 = vmatprep.subr.mxu0 0.0
    %1026 = vmatpush1.msra.mxu0 0.0
    %1027 = vmatprep.subr.mxu0 0.0
    %1028 = vmatpush1.msra.mxu0 0.0
    %1029 = vmatprep.subr.mxu0 0.0
    %1030 = vmatpush1.msra.mxu0 0.0
    %1031 = vmatprep.subr.mxu0 0.0
    %1032 = vmatpush1.msra.mxu0 0.0
    %1033 = vmatprep.subr.mxu0 0.0
    %1034 = vmatpush1.msra.mxu0 0.0
    %1035 = vmatprep.subr.mxu0 0.0
    %1036 = vmatpush1.msra.mxu0 0.0
    %1037 = vmatprep.subr.mxu0 0.0
    %1038 = vmatpush1.msra.mxu0 0.0
    %1039 = vmatprep.subr.mxu0 0.0
    %1040 = vmatpush1.msra.mxu0 0.0
    %1041 = vmatprep.subr.mxu0 0.0
    %1042 = vmatpush1.msra.mxu0 0.0
    %1043 = vmatprep.subr.mxu0 0.0
    %1044 = vmatpush1.msra.mxu0 0.0
    %1045 = vmatprep.subr.mxu0 0.0
    %1046 = vmatpush1.msra.mxu0 0.0
    %1047 = vmatprep.subr.mxu0 0.0
    %1048 = vmatpush1.msra.mxu0 0.0
    %1049 = vmatprep.subr.mxu0 0.0
    %1050 = vmatpush1.msra.mxu0 0.0
    %1051 = vmatprep.mubr.f32.mxu0 0.0
    %1052 = vmatmul.mubr.f32.gmra.mrb[0].mxu0 %v985
    %v1053 = vpop.f32.mrb[0].mxu0
    %v1054 = vadd.f32 %v982, %v1053
    %v1055 = vpop.f32.mrb[0].mxu0
    %1056 = vdwg.mxu0
    %1057 = vst [vmem:[#allocation5] sm:$0x3] %v1054
    // Predicated region
    $region30: #{tpu_custom_call.1} parent=1 // pred_check
      _
    $region31: #{tpu_custom_call.1} parent=1 // pred_check_branch
      %1059 = sbr.rel (0) target = $region33
    $region32: #{tpu_custom_call.1} parent=1 // pred_region
      %s1061 = ssub.s32 32, 32
      %1062 = vsyncadd [#allocation4], %s1061
      %s1064 = sshll.u32 [#allocation5], 4
      %s1065 = int_to_ptr.vmem [resolvable:$true] %s1064
      %1067 = dma.vmem_to_hbm [thread:$0]  %s1065, 32, %s6, [#allocation4]
    $region33: #{tpu_custom_call.1} parent=1 // pred_fallthru
      _
    // Predicated region
    $region34: #{tpu_custom_call.1} parent=1 // pred_check
      _
    $region35: #{tpu_custom_call.1} parent=1 // pred_check_branch
      %1069 = sbr.rel (0) target = $region37
    $region36: #{tpu_custom_call.1} parent=1 // pred_region
      %1070 = dma.done [#allocation4], 32
    $region37: #{tpu_custom_call.1} parent=1 // pred_fallthru
      _
    %1071 = vsyncpa [#allocation3], 1
    %1072 = vsyncpa [#allocation4], 1

</llo_original>
